<compile_context>
chip_gen: v7x
topology: tpu7x:2x2x1
jax: 0.10.0
libtpu: 0.0.40
codegen_flags: <defaults>
</compile_context>

<pallas_src>
import math

import jax
import jax.numpy as jnp
from jax.experimental import pallas as pl
from jax.experimental.pallas import tpu as pltpu

_LANES = 128      # vreg lane width: keep the last dim lane-dense
_SUBLANES = 8     # f32 sublane tiling


# ----------------------------------------------------------------------------- kernels


def _uniform_from_bits(shape):
    """Uniform [0, 1) float32 from the stateful hardware PRNG (mantissa bit-trick).

    Builds a float in [1, 2) by OR-ing 23 random bits into the mantissa of 1.0f and
    subtracting 1.0 — no int->float conversion, only shifts/or/bitcast (VPU) work.
    """
    bits = pltpu.prng_random_bits(shape)
    if bits.dtype != jnp.uint32:
        bits = pltpu.bitcast(bits, jnp.uint32)
    fbits = (bits >> 9) | jnp.uint32(0x3F800000)
    return pltpu.bitcast(fbits, jnp.float32) - 1.0


def _reparam_rng_kernel(seed_ref, mu_ref, logvar_ref, o_ref):
    """One (tm, 128) tile:  y = mu + exp(0.5*logvar) * eps, eps ~ N(0,1) sampled in-kernel."""
    # Deterministic, independent random stream per grid tile (core-assignment invariant).
    pltpu.prng_seed(seed_ref[0] + pl.program_id(0))

    mu = mu_ref[...].astype(jnp.float32)
    std = jnp.exp(0.5 * logvar_ref[...].astype(jnp.float32))

    # Box-Muller: eps = sqrt(-2 ln u1) * cos(2 pi u2), with u1 in (0,1], u2 in [0,1).
    u1 = 1.0 - _uniform_from_bits(mu.shape)
    u2 = _uniform_from_bits(mu.shape)
    r = jnp.sqrt(-2.0 * jnp.log(u1))
    eps = r * jnp.cos((2.0 * math.pi) * u2)

    o_ref[...] = (mu + std * eps).astype(o_ref.dtype)


def _reparam_fma_kernel(mu_ref, logvar_ref, eps_ref, o_ref):
    """Fallback tile kernel: eps is supplied from HBM (sampled outside with jax.random)."""
    mu = mu_ref[...].astype(jnp.float32)
    std = jnp.exp(0.5 * logvar_ref[...].astype(jnp.float32))
    o_ref[...] = (mu + std * eps_ref[...].astype(jnp.float32)).astype(o_ref.dtype)


# ----------------------------------------------------------------------------- wrapper


def _tiling(total_elems, block_rows):
    """Choose a (tm, rows_padded) pair with tm % 8 == 0 and rows_padded % tm == 0."""
    rows = pl.cdiv(total_elems, _LANES)
    if rows <= block_rows:
        tm = max(_SUBLANES, pl.cdiv(rows, _SUBLANES) * _SUBLANES)
        rows_padded = tm
    else:
        tm = block_rows
        rows_padded = pl.cdiv(rows, tm) * tm
    return tm, rows_padded


def _as_lane_matrix(x, rows_padded):
    """Flatten x and zero-pad into a lane-dense (rows_padded, 128) matrix."""
    flat = x.reshape(-1)
    pad = rows_padded * _LANES - flat.shape[0]
    if pad:
        flat = jnp.pad(flat, (0, pad))
    return flat.reshape(rows_padded, _LANES)


def reparameterize(mu, logvar, seed=0, *, block_rows=2048):
    """y = mu + exp(0.5 * logvar) * eps with eps ~ N(0, 1); mu/logvar of identical shape."""
    assert mu.shape == logvar.shape, (mu.shape, logvar.shape)
    orig_shape = mu.shape
    out_dtype = mu.dtype
    total = int(mu.size)

    tm, rows_padded = _tiling(total, block_rows)
    grid = (rows_padded // tm,)

    mu2d = _as_lane_matrix(mu, rows_padded)
    lv2d = _as_lane_matrix(logvar, rows_padded)

    # Same block spec for every operand; `*_` swallows the scalar-prefetch ref when present.
    block = pl.BlockSpec((tm, _LANES), lambda i, *_: (i, 0))
    compiler_params = pltpu.CompilerParams(dimension_semantics=("parallel",))
    out_shape = jax.ShapeDtypeStruct((rows_padded, _LANES), out_dtype)

    seed_arr = jnp.asarray([seed], dtype=jnp.int32)

    try:
        out2d = pl.pallas_call(
            _reparam_rng_kernel,
            out_shape=out_shape,
            grid_spec=pltpu.PrefetchScalarGridSpec(
                num_scalar_prefetch=1,        # seed lands in SMEM before the grid runs
                grid=grid,
                in_specs=[block, block],
                out_specs=block,
            ),
            compiler_params=compiler_params,
        )(seed_arr, mu2d, lv2d)
        out2d = jax.block_until_ready(out2d)
    except Exception:
        # TODO(synk): fallback path — if the in-kernel hardware-PRNG sampling path is not
        # supported by the local toolchain, sample eps with jax.random outside and run the
        # same tiled fused scale/shift kernel (costs one extra HBM stream for eps).
        eps2d = jax.random.normal(
            jax.random.PRNGKey(int(seed)), (rows_padded, _LANES), jnp.float32
        )
        out2d = pl.pallas_call(
            _reparam_fma_kernel,
            out_shape=out_shape,
            grid=grid,
            in_specs=[block, block, block],
            out_specs=block,
            compiler_params=compiler_params,
        )(mu2d, lv2d, eps2d)
        out2d = jax.block_until_ready(out2d)

    return out2d.reshape(-1)[:total].reshape(orig_shape)


# ----------------------------------------------------------------------------- self-test


if __name__ == "__main__":
    key = jax.random.PRNGKey(0)
    k_mu, k_lv = jax.random.split(key)

    shape = (2, 4, 16, 16)  # small latent tensor (batch=2, channels=4, 16x16) -> 2048 elems
    mu = jax.random.normal(k_mu, shape, dtype=jnp.float32)
    logvar = 0.5 * jax.random.normal(k_lv, shape, dtype=jnp.float32) - 1.0

    y = reparameterize(mu, logvar, seed=1234)
    y = jax.block_until_ready(y)
    assert y.shape == shape and y.dtype == mu.dtype, (y.shape, y.dtype)

    # Check 1: implied eps = (y - mu) / std must look like a standard normal.
    std = jnp.exp(0.5 * logvar)
    eps_implied = (y - mu) / std
    assert bool(jnp.all(jnp.isfinite(eps_implied)))
    m = float(jnp.mean(eps_implied))
    s = float(jnp.std(eps_implied))
    assert abs(m) < 0.2, m          # ~9 sigma bound for 2048 samples
    assert 0.85 < s < 1.15, s       # ~9 sigma bound for 2048 samples

    # Check 2: with (numerically) zero variance the sample must collapse onto mu.
    y_det = reparameterize(mu, jnp.full(shape, -80.0, dtype=jnp.float32), seed=7)
    y_det = jax.block_until_ready(y_det)
    assert float(jnp.max(jnp.abs(y_det - mu))) < 1e-6

    # Check 3: same seed -> identical sample; different seed -> different sample.
    y_same = reparameterize(mu, logvar, seed=1234)
    assert float(jnp.max(jnp.abs(y_same - y))) == 0.0
    y_diff = reparameterize(mu, logvar, seed=4321)
    assert float(jnp.max(jnp.abs(y_diff - y))) > 0.0

    print("KERNEL_OK")
</pallas_src>

<mosaic_0001>
module attributes {stable_mosaic.version = 11 : i64} {
  func.func @_reparam_rng_kernel(%arg0: i32, %arg1: memref<1xi32, #tpu.memory_space<smem>>, %arg2: memref<16x128xf32, #tpu.memory_space<vmem>>, %arg3: memref<16x128xf32, #tpu.memory_space<vmem>>, %arg4: memref<16x128xf32, #tpu.memory_space<vmem>>) attributes {dimension_semantics = [#tpu.dimension_semantics<parallel>], iteration_bounds = array<i64: 1>, scalar_prefetch = 1 : i64, scratch_operands = 0 : i64, tpu.core_type = #tpu.core_type<tc>, window_params = [{transform_indices = @transform_0, window_bounds = array<i64: 16, 128>}, {transform_indices = @transform_1, window_bounds = array<i64: 16, 128>}, {transform_indices = @transform_2, window_bounds = array<i64: 16, 128>}]} {
    %c0 = arith.constant 0 : index
    %0 = memref.load %arg1[%c0] : memref<1xi32, #tpu.memory_space<smem>>
    %1 = arith.addi %0, %arg0 : i32
    "tpu.prng_set_seed_32"(%1) : (i32) -> ()
    %c0_0 = arith.constant 0 : index
    %c0_1 = arith.constant 0 : index
    %2 = vector.load %arg2[%c0_0, %c0_1] : memref<16x128xf32, #tpu.memory_space<vmem>>, vector<16x128xf32>
    %c0_2 = arith.constant 0 : index
    %c0_3 = arith.constant 0 : index
    %3 = vector.load %arg3[%c0_2, %c0_3] : memref<16x128xf32, #tpu.memory_space<vmem>>, vector<16x128xf32>
    %cst = arith.constant 5.000000e-01 : f32
    %4 = vector.broadcast %cst : f32 to vector<16x128xf32>
    %5 = arith.mulf %4, %3 : vector<16x128xf32>
    %6 = math.exp %5 : vector<16x128xf32>
    %7 = "tpu.prng_random_bits"() : () -> vector<16x128xi32>
    %8 = tpu.bitcast %7 : vector<16x128xi32> -> vector<16x128xi32>
    %c9_i32 = arith.constant 9 : i32
    %9 = vector.broadcast %c9_i32 : i32 to vector<16x128xi32>
    %10 = arith.shrui %8, %9 : vector<16x128xi32>
    %c1065353216_i32 = arith.constant 1065353216 : i32
    %11 = vector.broadcast %c1065353216_i32 : i32 to vector<16x128xi32>
    %12 = arith.ori %10, %11 : vector<16x128xi32>
    %13 = tpu.bitcast %12 : vector<16x128xi32> -> vector<16x128xf32>
    %cst_4 = arith.constant 1.000000e+00 : f32
    %14 = vector.broadcast %cst_4 : f32 to vector<16x128xf32>
    %15 = arith.subf %13, %14 : vector<16x128xf32>
    %cst_5 = arith.constant 1.000000e+00 : f32
    %16 = vector.broadcast %cst_5 : f32 to vector<16x128xf32>
    %17 = arith.subf %16, %15 : vector<16x128xf32>
    %18 = "tpu.prng_random_bits"() : () -> vector<16x128xi32>
    %19 = tpu.bitcast %18 : vector<16x128xi32> -> vector<16x128xi32>
    %c9_i32_6 = arith.constant 9 : i32
    %20 = vector.broadcast %c9_i32_6 : i32 to vector<16x128xi32>
    %21 = arith.shrui %19, %20 : vector<16x128xi32>
    %c1065353216_i32_7 = arith.constant 1065353216 : i32
    %22 = vector.broadcast %c1065353216_i32_7 : i32 to vector<16x128xi32>
    %23 = arith.ori %21, %22 : vector<16x128xi32>
    %24 = tpu.bitcast %23 : vector<16x128xi32> -> vector<16x128xf32>
    %cst_8 = arith.constant 1.000000e+00 : f32
    %25 = vector.broadcast %cst_8 : f32 to vector<16x128xf32>
    %26 = arith.subf %24, %25 : vector<16x128xf32>
    %27 = math.log %17 : vector<16x128xf32>
    %cst_9 = arith.constant -2.000000e+00 : f32
    %28 = vector.broadcast %cst_9 : f32 to vector<16x128xf32>
    %29 = arith.mulf %28, %27 : vector<16x128xf32>
    %30 = math.sqrt %29 : vector<16x128xf32>
    %cst_10 = arith.constant 6.28318548 : f32
    %31 = vector.broadcast %cst_10 : f32 to vector<16x128xf32>
    %32 = arith.mulf %31, %26 : vector<16x128xf32>
    %33 = math.cos %32 : vector<16x128xf32>
    %34 = arith.mulf %30, %33 : vector<16x128xf32>
    %35 = arith.mulf %6, %34 : vector<16x128xf32>
    %36 = arith.addf %2, %35 : vector<16x128xf32>
    %c0_11 = arith.constant 0 : index
    %c0_12 = arith.constant 0 : index
    %37 = vector.load %arg4[%c0_11, %c0_12] : memref<16x128xf32, #tpu.memory_space<vmem>>, vector<16x128xf32>
    tpu.vector_store %arg4[%c0_11, %c0_12], %36 {strides = array<i32>} : memref<16x128xf32, #tpu.memory_space<vmem>>, vector<16x128xf32>,
    return
  }
  func.func @transform_0(%arg0: i32, %arg1: memref<1xi32, #tpu.memory_space<smem>>) -> (i32, i32) {
    %c0_i32 = arith.constant 0 : i32
    %c0_i32_0 = arith.constant 0 : i32
    return %arg0, %c0_i32 : i32, i32
  }
  func.func @transform_1(%arg0: i32, %arg1: memref<1xi32, #tpu.memory_space<smem>>) -> (i32, i32) {
    %c0_i32 = arith.constant 0 : i32
    %c0_i32_0 = arith.constant 0 : i32
    return %arg0, %c0_i32 : i32, i32
  }
  func.func @transform_2(%arg0: i32, %arg1: memref<1xi32, #tpu.memory_space<smem>>) -> (i32, i32) {
    %c0_i32 = arith.constant 0 : i32
    %c0_i32_0 = arith.constant 0 : i32
    return %arg0, %c0_i32 : i32, i32
  }
}

module attributes {stable_mosaic.version = 11 : i64} {
  func.func @_reparam_fma_kernel(%arg0: i32, %arg1: memref<16x128xf32, #tpu.memory_space<vmem>>, %arg2: memref<16x128xf32, #tpu.memory_space<vmem>>, %arg3: memref<16x128xf32, #tpu.memory_space<vmem>>, %arg4: memref<16x128xf32, #tpu.memory_space<vmem>>) attributes {dimension_semantics = [#tpu.dimension_semantics<parallel>], iteration_bounds = array<i64: 1>, scalar_prefetch = 0 : i64, scratch_operands = 0 : i64, tpu.core_type = #tpu.core_type<tc>, window_params = [{transform_indices = @transform_0, window_bounds = array<i64: 16, 128>}, {transform_indices = @transform_1, window_bounds = array<i64: 16, 128>}, {transform_indices = @transform_2, window_bounds = array<i64: 16, 128>}, {transform_indices = @transform_3, window_bounds = array<i64: 16, 128>}]} {
    %c0 = arith.constant 0 : index
    %c0_0 = arith.constant 0 : index
    %0 = vector.load %arg1[%c0, %c0_0] : memref<16x128xf32, #tpu.memory_space<vmem>>, vector<16x128xf32>
    %c0_1 = arith.constant 0 : index
    %c0_2 = arith.constant 0 : index
    %1 = vector.load %arg2[%c0_1, %c0_2] : memref<16x128xf32, #tpu.memory_space<vmem>>, vector<16x128xf32>
    %cst = arith.constant 5.000000e-01 : f32
    %2 = vector.broadcast %cst : f32 to vector<16x128xf32>
    %3 = arith.mulf %2, %1 : vector<16x128xf32>
    %4 = math.exp %3 : vector<16x128xf32>
    %c0_3 = arith.constant 0 : index
    %c0_4 = arith.constant 0 : index
    %5 = vector.load %arg3[%c0_3, %c0_4] : memref<16x128xf32, #tpu.memory_space<vmem>>, vector<16x128xf32>
    %6 = arith.mulf %4, %5 : vector<16x128xf32>
    %7 = arith.addf %0, %6 : vector<16x128xf32>
    %c0_5 = arith.constant 0 : index
    %c0_6 = arith.constant 0 : index
    %8 = vector.load %arg4[%c0_5, %c0_6] : memref<16x128xf32, #tpu.memory_space<vmem>>, vector<16x128xf32>
    tpu.vector_store %arg4[%c0_5, %c0_6], %7 {strides = array<i32>} : memref<16x128xf32, #tpu.memory_space<vmem>>, vector<16x128xf32>,
    return
  }
  func.func @transform_0(%arg0: i32) -> (i32, i32) {
    %c0_i32 = arith.constant 0 : i32
    %c0_i32_0 = arith.constant 0 : i32
    return %arg0, %c0_i32 : i32, i32
  }
  func.func @transform_1(%arg0: i32) -> (i32, i32) {
    %c0_i32 = arith.constant 0 : i32
    %c0_i32_0 = arith.constant 0 : i32
    return %arg0, %c0_i32 : i32, i32
  }
  func.func @transform_2(%arg0: i32) -> (i32, i32) {
    %c0_i32 = arith.constant 0 : i32
    %c0_i32_0 = arith.constant 0 : i32
    return %arg0, %c0_i32 : i32, i32
  }
  func.func @transform_3(%arg0: i32) -> (i32, i32) {
    %c0_i32 = arith.constant 0 : i32
    %c0_i32_0 = arith.constant 0 : i32
    return %arg0, %c0_i32 : i32, i32
  }
}

</mosaic_0001>

<llo_original>
// kernel: tpu_custom_call.1
$region0: #{tpu_custom_call.1}
  #allocation0 [shape = 'u32[]', space=smem, size = 0x4, offset = 0x4, fixed_abs, tag = 'smem constant byte address 0x4 - core index']
  #allocation1 [shape = 'u32[144,128]{1,0:T(1,128)}', space=vmem, size = 0x12000, scoped, tag = 'internal scratch']
  #allocation2 [shape = 's32[1]{0}', space=sflag, size = 0x4, scoped, tag = 'scoped memory for tpu_custom_call.1']
  #allocation3 [shape = 's32[1]{0:T(128)S(6)}', space=smem, size = 0x200, scoped, tag = 'prefetched SMEM operand 0']
  %s0 = inlined_call_operand.<no memory space> [shape: s32[1], index: 0, kind: input, shape index: {}]
  %s1 = inlined_call_operand.hbm [shape: f32[16,128], index: 1, kind: input, shape index: {}]
  %s2 = inlined_call_operand.hbm [shape: f32[16,128], index: 2, kind: input, shape index: {}]
  %s3 = inlined_call_operand.hbm [shape: f32[16,128], index: 3, kind: output, shape index: {}]
  %s4 = sld [smem:[#allocation0]]
  $region26: #{tpu_custom_call.1} parent=0
    _
  %s6 = ssub.s32 1, %s4
  %s7 = scalar_select 0, %s6, %s4
  %8 = sst [smem:[#allocation3]] %s0
  $region1: #{tpu_custom_call.1} parent=0
    #allocation4 [shape = 'u8[8192]{0}', space=vmem, size = 0x2000, scoped, tag = 'input window, operand 1, single buffered']
    #allocation5 [shape = 's32[1]{0}', space=sflag, size = 0x4, scoped, tag = 'scoped memory for tpu_custom_call.1']
    #allocation6 [shape = 's32[1]{0}', space=sflag, size = 0x4, scoped, tag = 'scoped memory for tpu_custom_call.1']
    #allocation7 [shape = 'u8[8192]{0}', space=vmem, size = 0x2000, scoped, tag = 'input window, operand 2, single buffered']
    #allocation8 [shape = 's32[1]{0}', space=sflag, size = 0x4, scoped, tag = 'scoped memory for tpu_custom_call.1']
    #allocation9 [shape = 'u8[8192]{0}', space=vmem, size = 0x2000, scoped, tag = 'output window, operand 0, single buffered']
    %9 = vsyncpa [#allocation5], 0
    %10 = vsyncpa [#allocation8], 0
    %11 = vsyncpa [#allocation6], 0
    // Predicated region
    $region2: #{tpu_custom_call.1} parent=1 // pred_check
      _
    $region3: #{tpu_custom_call.1} parent=1 // pred_check_branch
      %13 = sbr.rel (0) target = $region5
    $region4: #{tpu_custom_call.1} parent=1 // pred_region
      %s15 = ssub.s32 256, 256
      %16 = vsyncadd [#allocation5], %s15
      %s17 = sshll.u32 [#allocation4], 4
      %s18 = int_to_ptr.vmem [resolvable:$true] %s17
      %23 = dma.hbm_to_vmem [thread:$0]  %s1, 256, %s18, [#allocation5], 128, 128, 8
    $region5: #{tpu_custom_call.1} parent=1 // pred_fallthru
      _
    // Predicated region
    $region6: #{tpu_custom_call.1} parent=1 // pred_check
      _
    $region7: #{tpu_custom_call.1} parent=1 // pred_check_branch
      %25 = sbr.rel (0) target = $region9
    $region8: #{tpu_custom_call.1} parent=1 // pred_region
      %s27 = ssub.s32 256, 256
      %28 = vsyncadd [#allocation8], %s27
      %s29 = sshll.u32 [#allocation7], 4
      %s30 = int_to_ptr.vmem [resolvable:$true] %s29
      %35 = dma.hbm_to_vmem [thread:$0]  %s2, 256, %s30, [#allocation8], 128, 128, 8
    $region9: #{tpu_custom_call.1} parent=1 // pred_fallthru
      _
    // Predicated region
    $region10: #{tpu_custom_call.1} parent=1 // pred_check
      _
    $region11: #{tpu_custom_call.1} parent=1 // pred_check_branch
      %37 = sbr.rel (0) target = $region13
    $region12: #{tpu_custom_call.1} parent=1 // pred_region
      %38 = dma.done [#allocation5], 256
    $region13: #{tpu_custom_call.1} parent=1 // pred_fallthru
      _
    // Predicated region
    $region14: #{tpu_custom_call.1} parent=1 // pred_check
      _
    $region15: #{tpu_custom_call.1} parent=1 // pred_check_branch
      %40 = sbr.rel (0) target = $region17
    $region16: #{tpu_custom_call.1} parent=1 // pred_region
      %41 = dma.done [#allocation8], 256
    $region17: #{tpu_custom_call.1} parent=1 // pred_fallthru
      _
    %s42 = sld [smem:[#allocation3]]
    %s43 = sadd.s32 %s42, 0
    %v44 = vlaneseq
    %v45 = vstv %s43
    %v46 = vxor.u32 %v45, %v45
    %v47 = vxor.u32 %v46, 466688986
    %v48 = vadd.s32 %v44, %v45
    %v49 = vadd.s32 %v48, %v48
    %v50 = vshll.u32 %v48, 13
    %v51 = vshrl.u32 %v48, 19
    %v52 = vor.u32 %v50, %v51
    %v53 = vxor.u32 %v49, %v52
    %v54 = vadd.s32 %v49, %v53
    %v55 = vshll.u32 %v53, 15
    %v56 = vshrl.u32 %v53, 17
    %v57 = vor.u32 %v55, %v56
    %v58 = vxor.u32 %v54, %v57
    %v59 = vadd.s32 %v54, %v58
    %v60 = vshll.u32 %v58, 26
    %v61 = vshrl.u32 %v58, 6
    %v62 = vor.u32 %v60, %v61
    %v63 = vxor.u32 %v59, %v62
    %v64 = vadd.s32 %v59, %v63
    %v65 = vshll.u32 %v63, 6
    %v66 = vshrl.u32 %v63, 26
    %v67 = vor.u32 %v65, %v66
    %v68 = vxor.u32 %v64, %v67
    %v69 = vadd.s32 %v64, %v45
    %v70 = vadd.s32 %v68, %v47
    %v71 = vadd.s32 %v70, 1
    %v72 = vadd.s32 %v69, %v71
    %v73 = vshll.u32 %v71, 17
    %v74 = vshrl.u32 %v71, 15
    %v75 = vor.u32 %v73, %v74
    %v76 = vxor.u32 %v72, %v75
    %v77 = vadd.s32 %v72, %v76
    %v78 = vshll.u32 %v76, 29
    %v79 = vshrl.u32 %v76, 3
    %v80 = vor.u32 %v78, %v79
    %v81 = vxor.u32 %v77, %v80
    %v82 = vadd.s32 %v77, %v81
    %v83 = vshll.u32 %v81, 16
    %v84 = vshrl.u32 %v81, 16
    %v85 = vor.u32 %v83, %v84
    %v86 = vxor.u32 %v82, %v85
    %v87 = vadd.s32 %v82, %v86
    %v88 = vshll.u32 %v86, 24
    %v89 = vshrl.u32 %v86, 8
    %v90 = vor.u32 %v88, %v89
    %v91 = vxor.u32 %v87, %v90
    %v92 = vadd.s32 %v87, %v47
    %v93 = vadd.s32 %v91, %v45
    %v94 = vadd.s32 %v93, 2
    %v95 = vadd.s32 %v92, %v94
    %v96 = vshll.u32 %v94, 13
    %v97 = vshrl.u32 %v94, 19
    %v98 = vor.u32 %v96, %v97
    %v99 = vxor.u32 %v95, %v98
    %v100 = vadd.s32 %v95, %v99
    %v101 = vshll.u32 %v99, 15
    %v102 = vshrl.u32 %v99, 17
    %v103 = vor.u32 %v101, %v102
    %v104 = vxor.u32 %v100, %v103
    %v105 = vadd.s32 %v100, %v104
    %v106 = vshll.u32 %v104, 26
    %v107 = vshrl.u32 %v104, 6
    %v108 = vor.u32 %v106, %v107
    %v109 = vxor.u32 %v105, %v108
    %v110 = vadd.s32 %v105, %v109
    %v111 = vshll.u32 %v109, 6
    %v112 = vshrl.u32 %v109, 26
    %v113 = vor.u32 %v111, %v112
    %v114 = vxor.u32 %v110, %v113
    %v115 = vadd.s32 %v110, %v45
    %v116 = vadd.s32 %v114, %v45
    %v117 = vadd.s32 %v116, 3
    %v118 = vadd.s32 %v115, %v117
    %v119 = vshll.u32 %v117, 17
    %v120 = vshrl.u32 %v117, 15
    %v121 = vor.u32 %v119, %v120
    %v122 = vxor.u32 %v118, %v121
    %v123 = vadd.s32 %v118, %v122
    %v124 = vshll.u32 %v122, 29
    %v125 = vshrl.u32 %v122, 3
    %v126 = vor.u32 %v124, %v125
    %v127 = vxor.u32 %v123, %v126
    %v128 = vadd.s32 %v123, %v127
    %v129 = vshll.u32 %v127, 16
    %v130 = vshrl.u32 %v127, 16
    %v131 = vor.u32 %v129, %v130
    %v132 = vxor.u32 %v128, %v131
    %v133 = vadd.s32 %v128, %v132
    %v134 = vshll.u32 %v132, 24
    %v135 = vshrl.u32 %v132, 8
    %v136 = vor.u32 %v134, %v135
    %v137 = vxor.u32 %v133, %v136
    %v138 = vadd.s32 %v133, %v45
    %v139 = vadd.s32 %v137, %v47
    %v140 = vadd.s32 %v139, 4
    %v141 = vadd.s32 %v138, %v140
    %v142 = vshll.u32 %v140, 13
    %v143 = vshrl.u32 %v140, 19
    %v144 = vor.u32 %v142, %v143
    %v145 = vxor.u32 %v141, %v144
    %v146 = vadd.s32 %v141, %v145
    %v147 = vshll.u32 %v145, 15
    %v148 = vshrl.u32 %v145, 17
    %v149 = vor.u32 %v147, %v148
    %v150 = vxor.u32 %v146, %v149
    %v151 = vadd.s32 %v146, %v150
    %v152 = vshll.u32 %v150, 26
    %v153 = vshrl.u32 %v150, 6
    %v154 = vor.u32 %v152, %v153
    %v155 = vxor.u32 %v151, %v154
    %v156 = vadd.s32 %v151, %v155
    %v157 = vshll.u32 %v155, 6
    %v158 = vshrl.u32 %v155, 26
    %v159 = vor.u32 %v157, %v158
    %v160 = vxor.u32 %v156, %v159
    %v161 = vadd.s32 %v156, %v47
    %v162 = vadd.s32 %v160, %v45
    %v163 = vadd.s32 %v162, 5
    %v164 = vxor.u32 %v161, %v163
    %165 = set.rngseed %v164
    %v166 = vld [vmem:[#allocation4] sm:$0xff]
    %v167 = vld [vmem:[#allocation4 + $0x8] sm:$0xff]
    %v168 = vld [vmem:[#allocation7] sm:$0xff]
    %v169 = vld [vmem:[#allocation7 + $0x8] sm:$0xff]
    %v170 = vmul.f32 %v168, 0.5
    %v171 = vmul.f32 %v169, 0.5
    %v172 = vmul.f32 %v170, 1.442695
    %v173 = vpow.pop %v172
    %v174 = vmul.f32 %v171, 1.442695
    %v175 = vpow.pop %v174
    %v176 = vrng
    %v177 = vrng
    %v178 = vshrl.u32 %v176, 9
    %v179 = vshrl.u32 %v177, 9
    %v180 = vor.u32 %v178, 1065353216
    %v181 = vor.u32 %v179, 1065353216
    %v184 = vsub.f32 %v180, 1.0
    %v185 = vsub.f32 %v181, 1.0
    %v186 = vsub.f32 1.0, %v184
    %v187 = vsub.f32 1.0, %v185
    %v188 = vrng
    %v189 = vrng
    %v190 = vshrl.u32 %v188, 9
    %v191 = vshrl.u32 %v189, 9
    %v192 = vor.u32 %v190, 1065353216
    %v193 = vor.u32 %v191, 1065353216
    %v196 = vsub.f32 %v192, 1.0
    %v197 = vsub.f32 %v193, 1.0
    %v198 = vlog2.pop %v186
    %v199 = vmul.f32 %v198, 0.6931472
    %v200 = vlog2.pop %v187
    %v201 = vmul.f32 %v200, 0.6931472
    %v202 = vmul.f32 %v199, -2.0
    %v203 = vmul.f32 %v201, -2.0
    %v204 = vrsqrt.pop %v202
    %v205 = vmul.f32 %v202, %v204
    %vm206 = vcmp.eq.f32.partialorder %v202, inf
    %v207 = vsel %vm206, %v202, %v205
    %vm208 = vcmp.eq.f32.partialorder %v202, 0.0
    %v209 = vand.u32 %v202, 2147483648
    %v210 = vsel %vm208, %v209, %v207
    %v211 = vrsqrt.pop %v203
    %v212 = vmul.f32 %v203, %v211
    %vm213 = vcmp.eq.f32.partialorder %v203, inf
    %v214 = vsel %vm213, %v203, %v212
    %vm215 = vcmp.eq.f32.partialorder %v203, 0.0
    %v216 = vand.u32 %v203, 2147483648
    %v217 = vsel %vm215, %v216, %v214
    %v218 = vmul.f32 %v196, 6.2831855
    %v219 = vmul.f32 %v197, 6.2831855
    %v220 = vand.u32 2147483647, %v218
    %vm221 = vcmp.le.f32.partialorder %v220, 0.7853982
    %vm222 = vcmp.lt.s32.totalorder %v218, 0
    %v223 = vand.u32 %v218, 2139095040
    %v224 = vshrl.u32 %v223, 23
    %v225 = vsub.s32 %v224, 127
    %v226 = vand.u32 2147483647, %v218
    %v227 = vand.u32 %v226, 8388607
    %v228 = vor.u32 %v227, 8388608
    %v229 = vsub.s32 0, %v228
    %v230 = vadd.s32 %v225, 1
    %vm231 = vcmp.gt.s32.totalorder %v230, 0
    %v232 = vsel %vm231, %v230, 0
    %v233 = vshrl.u32 %v232, 5
    %v234 = vand.u32 %v232, 31
    %v235 = vsub.s32 32, %v234
    %v236 = vshrl.u32 683565275, %v235
    %v237 = vshll.u32 683565275, %v234
    %v238 = vshrl.u32 2475754826, %v235
    %v239 = vor.u32 %v237, %v238
    %v240 = vshll.u32 2475754826, %v234
    %v241 = vshrl.u32 2131351028, %v235
    %v242 = vor.u32 %v240, %v241
    %v243 = vshll.u32 2131351028, %v234
    %v244 = vshrl.u32 2102212464, %v235
    %v245 = vor.u32 %v243, %v244
    %v246 = vshll.u32 2102212464, %v234
    %v247 = vshrl.u32 920167782, %v235
    %v248 = vor.u32 %v246, %v247
    %v249 = vshll.u32 920167782, %v234
    %v250 = vshrl.u32 1326507024, %v235
    %v251 = vor.u32 %v249, %v250
    %vm252 = vcmp.lt.s32.totalorder %v233, 1
    %vm253 = vcmp.lt.s32.totalorder %v233, 2
    %vm254 = vcmp.lt.s32.totalorder %v233, 3
    %vm255 = vcmp.lt.s32.totalorder %v233, 4
    %v256 = vsel %vm252, %v236, %v239
    %v257 = vsel %vm255, %v245, 2102212464
    %v258 = vsel %vm254, %v242, %v257
    %v259 = vsel %vm253, %v256, %v258
    %v260 = vsel %vm252, %v239, %v242
    %v261 = vsel %vm255, %v248, 920167782
    %v262 = vsel %vm254, %v245, %v261
    %v263 = vsel %vm253, %v260, %v262
    %v264 = vsel %vm252, %v242, %v245
    %v265 = vsel %vm255, %v251, 1326507024
    %v266 = vsel %vm254, %v248, %v265
    %v267 = vsel %vm253, %v264, %v266
    %v268 = vshll.u32 %v228, 8
    %v269 = vmul.u32.u64.compose %v268, %v267
    %v270 = vextract.low.u32 %v269
    %v271 = vextract.high.u32 %v269
    %v272 = vmul.u32.u64.compose %v268, %v263
    %v273 = vextract.low.u32 %v272
    %v274 = vextract.high.u32 %v272
    %v275 = vmul.u32 %v268, %v259
    %v276 = vadd.s32 %v271, %v273
    %vm277 = vc.u32 %v271, %v273
    %v278 = vadd.s32 %v274, 1
    %v279 = vsel %vm277, %v278, %v274
    %v280 = vadd.s32 %v275, %v279
    %v281 = vadd.s32 %v280, 536870912
    %v282 = vshrl.u32 %v281, 30
    %v283 = vshll.u32 %v282, 30
    %v284 = vsub.s32 %v280, %v283
    %vm285 = vcmp.lt.s32.totalorder %v284, 0
    %v286 = vsub.s32 0, %v284
    %v287 = vsel %vm285, %v286, %v284
    %v288 = vclz %v287
    %v289 = vsub.s32 %v288, 2
    %vm290 = vcmp.gt.s32.totalorder 0, %v289
    %v291 = vsel %vm290, 0, %v289
    %v292 = vsub.s32 32, %v291
    %v293 = vshll.u32 %v284, %v291
    %v294 = vshrl.u32 %v276, %v292
    %v295 = vor.u32 %v293, %v294
    %v296 = vsub.s32 4294967266, %v291
    %v297 = vadd.s32 %v296, 127
    %v298 = vshll.u32 %v297, 23
    %v299 = vor.u32 4788187, %v298
    %v300 = vand.u32 2147483647, %v299
    %v302 = vcvt.s32.f32 %v295
    %v303 = vmul.f32 %v302, %v300
    %v304 = vxor.u32 %v303, 2147483648
    %v305 = vsel %vm222, %v304, %v303
    %v306 = vsub.s32 4, %v282
    %v307 = vsel %vm222, %v306, %v282
    %v308 = vsel %vm221, %v218, %v305
    %v309 = vsel %vm221, 0, %v307
    %v310 = vcosq.f32.pop %v308
    %v311 = vsinq.f32.pop %v308
    %vm312 = vweird.f32 %v218
    %v313 = vand.u32 %v309, 3
    %vm314 = vcmp.lt.s32.totalorder %v313, 2
    %vm315 = vcmp.eq.s32.totalorder %v313, 0
    %v316 = vxor.u32 %v311, 2147483648
    %v317 = vsel %vm315, %v310, %v316
    %vm318 = vcmp.eq.s32.totalorder %v313, 2
    %v319 = vxor.u32 %v310, 2147483648
    %v320 = vsel %vm318, %v319, %v311
    %v321 = vsel %vm314, %v317, %v320
    %v322 = vsel %vm312, nan, %v321
    %v323 = vand.u32 2147483647, %v219
    %vm324 = vcmp.le.f32.partialorder %v323, 0.7853982
    %vm325 = vcmp.lt.s32.totalorder %v219, 0
    %v326 = vand.u32 %v219, 2139095040
    %v327 = vshrl.u32 %v326, 23
    %v328 = vsub.s32 %v327, 127
    %v329 = vand.u32 2147483647, %v219
    %v330 = vand.u32 %v329, 8388607
    %v331 = vor.u32 %v330, 8388608
    %v332 = vsub.s32 0, %v331
    %v333 = vadd.s32 %v328, 1
    %vm334 = vcmp.gt.s32.totalorder %v333, 0
    %v335 = vsel %vm334, %v333, 0
    %v336 = vshrl.u32 %v335, 5
    %v337 = vand.u32 %v335, 31
    %v338 = vsub.s32 32, %v337
    %v339 = vshrl.u32 683565275, %v338
    %v340 = vshll.u32 683565275, %v337
    %v341 = vshrl.u32 2475754826, %v338
    %v342 = vor.u32 %v340, %v341
    %v343 = vshll.u32 2475754826, %v337
    %v344 = vshrl.u32 2131351028, %v338
    %v345 = vor.u32 %v343, %v344
    %v346 = vshll.u32 2131351028, %v337
    %v347 = vshrl.u32 2102212464, %v338
    %v348 = vor.u32 %v346, %v347
    %v349 = vshll.u32 2102212464, %v337
    %v350 = vshrl.u32 920167782, %v338
    %v351 = vor.u32 %v349, %v350
    %v352 = vshll.u32 920167782, %v337
    %v353 = vshrl.u32 1326507024, %v338
    %v354 = vor.u32 %v352, %v353
    %vm355 = vcmp.lt.s32.totalorder %v336, 1
    %vm356 = vcmp.lt.s32.totalorder %v336, 2
    %vm357 = vcmp.lt.s32.totalorder %v336, 3
    %vm358 = vcmp.lt.s32.totalorder %v336, 4
    %v359 = vsel %vm355, %v339, %v342
    %v360 = vsel %vm358, %v348, 2102212464
    %v361 = vsel %vm357, %v345, %v360
    %v362 = vsel %vm356, %v359, %v361
    %v363 = vsel %vm355, %v342, %v345
    %v364 = vsel %vm358, %v351, 920167782
    %v365 = vsel %vm357, %v348, %v364
    %v366 = vsel %vm356, %v363, %v365
    %v367 = vsel %vm355, %v345, %v348
    %v368 = vsel %vm358, %v354, 1326507024
    %v369 = vsel %vm357, %v351, %v368
    %v370 = vsel %vm356, %v367, %v369
    %v371 = vshll.u32 %v331, 8
    %v372 = vmul.u32.u64.compose %v371, %v370
    %v373 = vextract.low.u32 %v372
    %v374 = vextract.high.u32 %v372
    %v375 = vmul.u32.u64.compose %v371, %v366
    %v376 = vextract.low.u32 %v375
    %v377 = vextract.high.u32 %v375
    %v378 = vmul.u32 %v371, %v362
    %v379 = vadd.s32 %v374, %v376
    %vm380 = vc.u32 %v374, %v376
    %v381 = vadd.s32 %v377, 1
    %v382 = vsel %vm380, %v381, %v377
    %v383 = vadd.s32 %v378, %v382
    %v384 = vadd.s32 %v383, 536870912
    %v385 = vshrl.u32 %v384, 30
    %v386 = vshll.u32 %v385, 30
    %v387 = vsub.s32 %v383, %v386
    %vm388 = vcmp.lt.s32.totalorder %v387, 0
    %v389 = vsub.s32 0, %v387
    %v390 = vsel %vm388, %v389, %v387
    %v391 = vclz %v390
    %v392 = vsub.s32 %v391, 2
    %vm393 = vcmp.gt.s32.totalorder 0, %v392
    %v394 = vsel %vm393, 0, %v392
    %v395 = vsub.s32 32, %v394
    %v396 = vshll.u32 %v387, %v394
    %v397 = vshrl.u32 %v379, %v395
    %v398 = vor.u32 %v396, %v397
    %v399 = vsub.s32 4294967266, %v394
    %v400 = vadd.s32 %v399, 127
    %v401 = vshll.u32 %v400, 23
    %v402 = vor.u32 4788187, %v401
    %v403 = vand.u32 2147483647, %v402
    %v405 = vcvt.s32.f32 %v398
    %v406 = vmul.f32 %v405, %v403
    %v407 = vxor.u32 %v406, 2147483648
    %v408 = vsel %vm325, %v407, %v406
    %v409 = vsub.s32 4, %v385
    %v410 = vsel %vm325, %v409, %v385
    %v411 = vsel %vm324, %v219, %v408
    %v412 = vsel %vm324, 0, %v410
    %v413 = vcosq.f32.pop %v411
    %v414 = vsinq.f32.pop %v411
    %vm415 = vweird.f32 %v219
    %v416 = vand.u32 %v412, 3
    %vm417 = vcmp.lt.s32.totalorder %v416, 2
    %vm418 = vcmp.eq.s32.totalorder %v416, 0
    %v419 = vxor.u32 %v414, 2147483648
    %v420 = vsel %vm418, %v413, %v419
    %vm421 = vcmp.eq.s32.totalorder %v416, 2
    %v422 = vxor.u32 %v413, 2147483648
    %v423 = vsel %vm421, %v422, %v414
    %v424 = vsel %vm417, %v420, %v423
    %v425 = vsel %vm415, nan, %v424
    %v426 = vmul.f32 %v210, %v322
    %v427 = vmul.f32 %v217, %v425
    %v428 = vmul.f32 %v173, %v426
    %v429 = vmul.f32 %v175, %v427
    %v430 = vadd.f32 %v166, %v428
    %v431 = vadd.f32 %v167, %v429
    %432 = vst [vmem:[#allocation9] sm:$0xff] %v430
    %433 = vst [vmem:[#allocation9 + $0x8] sm:$0xff] %v431
    // Predicated region
    $region18: #{tpu_custom_call.1} parent=1 // pred_check
      _
    $region19: #{tpu_custom_call.1} parent=1 // pred_check_branch
      %435 = sbr.rel (0) target = $region21
    $region20: #{tpu_custom_call.1} parent=1 // pred_region
      %s437 = ssub.s32 256, 256
      %438 = vsyncadd [#allocation6], %s437
      %s439 = sshll.u32 [#allocation9], 4
      %s440 = int_to_ptr.vmem [resolvable:$true] %s439
      %445 = dma.vmem_to_hbm [thread:$0]  %s440, 256, %s3, [#allocation6], 128, 128, 8
    $region21: #{tpu_custom_call.1} parent=1 // pred_fallthru
      _
    // Predicated region
    $region22: #{tpu_custom_call.1} parent=1 // pred_check
      _
    $region23: #{tpu_custom_call.1} parent=1 // pred_check_branch
      %447 = sbr.rel (0) target = $region25
    $region24: #{tpu_custom_call.1} parent=1 // pred_region
      %448 = dma.done [#allocation6], 256
    $region25: #{tpu_custom_call.1} parent=1 // pred_fallthru
      _
    %449 = vsyncpa [#allocation5], 1
    %450 = vsyncpa [#allocation8], 1
    %451 = vsyncpa [#allocation6], 1

// kernel: tpu_custom_call.1
$region0: #{tpu_custom_call.1}
  #allocation0 [shape = 'u32[]', space=smem, size = 0x4, offset = 0x4, fixed_abs, tag = 'smem constant byte address 0x4 - core index']
  #allocation1 [shape = 'u32[144,128]{1,0:T(1,128)}', space=vmem, size = 0x12000, scoped, tag = 'internal scratch']
  %s0 = inlined_call_operand.hbm [shape: f32[16,128], index: 0, kind: input, shape index: {}]
  %s1 = inlined_call_operand.hbm [shape: f32[16,128], index: 1, kind: input, shape index: {}]
  %s2 = inlined_call_operand.hbm [shape: f32[16,128], index: 2, kind: input, shape index: {}]
  %s3 = inlined_call_operand.hbm [shape: f32[16,128], index: 3, kind: output, shape index: {}]
  %s4 = sld [smem:[#allocation0]]
  $region34: #{tpu_custom_call.1} parent=0
    _
  %s6 = ssub.s32 1, %s4
  %s7 = scalar_select 0, %s6, %s4
  $region1: #{tpu_custom_call.1} parent=0
    #allocation2 [shape = 'u8[8192]{0}', space=vmem, size = 0x2000, scoped, tag = 'input window, operand 0, single buffered']
    #allocation3 [shape = 's32[1]{0}', space=sflag, size = 0x4, scoped, tag = 'scoped memory for tpu_custom_call.1']
    #allocation4 [shape = 's32[1]{0}', space=sflag, size = 0x4, scoped, tag = 'scoped memory for tpu_custom_call.1']
    #allocation5 [shape = 'u8[8192]{0}', space=vmem, size = 0x2000, scoped, tag = 'input window, operand 1, single buffered']
    #allocation6 [shape = 's32[1]{0}', space=sflag, size = 0x4, scoped, tag = 'scoped memory for tpu_custom_call.1']
    #allocation7 [shape = 'u8[8192]{0}', space=vmem, size = 0x2000, scoped, tag = 'input window, operand 2, single buffered']
    #allocation8 [shape = 'u8[8192]{0}', space=vmem, size = 0x2000, scoped, tag = 'output window, operand 0, single buffered']
    %8 = vsyncpa [#allocation3], 0
    %9 = vsyncpa [#allocation6], 0
    %10 = vsyncpa [#allocation4], 0
    // Predicated region
    $region2: #{tpu_custom_call.1} parent=1 // pred_check
      _
    $region3: #{tpu_custom_call.1} parent=1 // pred_check_branch
      %12 = sbr.rel (0) target = $region5
    $region4: #{tpu_custom_call.1} parent=1 // pred_region
      %s14 = ssub.s32 256, 256
      %15 = vsyncadd [#allocation3], %s14
      %s16 = sshll.u32 [#allocation2], 4
      %s17 = int_to_ptr.vmem [resolvable:$true] %s16
      %22 = dma.hbm_to_vmem [thread:$0]  %s0, 256, %s17, [#allocation3], 128, 128, 8
    $region5: #{tpu_custom_call.1} parent=1 // pred_fallthru
      _
    // Predicated region
    $region6: #{tpu_custom_call.1} parent=1 // pred_check
      _
    $region7: #{tpu_custom_call.1} parent=1 // pred_check_branch
      %24 = sbr.rel (0) target = $region9
    $region8: #{tpu_custom_call.1} parent=1 // pred_region
      %s26 = ssub.s32 256, 256
      %27 = vsyncadd [#allocation6], %s26
      %s28 = sshll.u32 [#allocation5], 4
      %s29 = int_to_ptr.vmem [resolvable:$true] %s28
      %34 = dma.hbm_to_vmem [thread:$0]  %s1, 256, %s29, [#allocation6], 128, 128, 8
    $region9: #{tpu_custom_call.1} parent=1 // pred_fallthru
      _
    // Predicated region
    $region10: #{tpu_custom_call.1} parent=1 // pred_check
      _
    $region11: #{tpu_custom_call.1} parent=1 // pred_check_branch
      %36 = sbr.rel (0) target = $region13
    $region12: #{tpu_custom_call.1} parent=1 // pred_region
      %s38 = ssub.s32 256, 256
      %39 = vsyncadd [#allocation6], %s38
      %s40 = sshll.u32 [#allocation7], 4
      %s41 = int_to_ptr.vmem [resolvable:$true] %s40
      %46 = dma.hbm_to_vmem [thread:$0]  %s2, 256, %s41, [#allocation6], 128, 128, 8
    $region13: #{tpu_custom_call.1} parent=1 // pred_fallthru
      _
    // Predicated region
    $region14: #{tpu_custom_call.1} parent=1 // pred_check
      _
    $region15: #{tpu_custom_call.1} parent=1 // pred_check_branch
      %48 = sbr.rel (0) target = $region17
    $region16: #{tpu_custom_call.1} parent=1 // pred_region
      %49 = dma.done [#allocation3], 256
    $region17: #{tpu_custom_call.1} parent=1 // pred_fallthru
      _
    // Predicated region
    $region18: #{tpu_custom_call.1} parent=1 // pred_check
      _
    $region19: #{tpu_custom_call.1} parent=1 // pred_check_branch
      %51 = sbr.rel (0) target = $region21
    $region20: #{tpu_custom_call.1} parent=1 // pred_region
      %52 = dma.done [#allocation6], 256
    $region21: #{tpu_custom_call.1} parent=1 // pred_fallthru
      _
    // Predicated region
    $region22: #{tpu_custom_call.1} parent=1 // pred_check
      _
    $region23: #{tpu_custom_call.1} parent=1 // pred_check_branch
      %54 = sbr.rel (0) target = $region25
    $region24: #{tpu_custom_call.1} parent=1 // pred_region
      %55 = dma.done [#allocation6], 256
    $region25: #{tpu_custom_call.1} parent=1 // pred_fallthru
      _
    %v56 = vld [vmem:[#allocation2] sm:$0xff]
    %v57 = vld [vmem:[#allocation2 + $0x8] sm:$0xff]
    %v58 = vld [vmem:[#allocation5] sm:$0xff]
    %v59 = vld [vmem:[#allocation5 + $0x8] sm:$0xff]
    %v60 = vmul.f32 %v58, 0.5
    %v61 = vmul.f32 %v59, 0.5
    %v62 = vmul.f32 %v60, 1.442695
    %v63 = vpow.pop %v62
    %v64 = vmul.f32 %v61, 1.442695
    %v65 = vpow.pop %v64
    %v66 = vld [vmem:[#allocation7] sm:$0xff]
    %v67 = vld [vmem:[#allocation7 + $0x8] sm:$0xff]
    %v68 = vmul.f32 %v63, %v66
    %v69 = vmul.f32 %v65, %v67
    %v70 = vadd.f32 %v56, %v68
    %v71 = vadd.f32 %v57, %v69
    %72 = vst [vmem:[#allocation8] sm:$0xff] %v70
    %73 = vst [vmem:[#allocation8 + $0x8] sm:$0xff] %v71
    // Predicated region
    $region26: #{tpu_custom_call.1} parent=1 // pred_check
      _
    $region27: #{tpu_custom_call.1} parent=1 // pred_check_branch
      %75 = sbr.rel (0) target = $region29
    $region28: #{tpu_custom_call.1} parent=1 // pred_region
      %s77 = ssub.s32 256, 256
      %78 = vsyncadd [#allocation4], %s77
      %s79 = sshll.u32 [#allocation8], 4
      %s80 = int_to_ptr.vmem [resolvable:$true] %s79
      %85 = dma.vmem_to_hbm [thread:$0]  %s80, 256, %s3, [#allocation4], 128, 128, 8
    $region29: #{tpu_custom_call.1} parent=1 // pred_fallthru
      _
    // Predicated region
    $region30: #{tpu_custom_call.1} parent=1 // pred_check
      _
    $region31: #{tpu_custom_call.1} parent=1 // pred_check_branch
      %87 = sbr.rel (0) target = $region33
    $region32: #{tpu_custom_call.1} parent=1 // pred_region
      %88 = dma.done [#allocation4], 256
    $region33: #{tpu_custom_call.1} parent=1 // pred_fallthru
      _
    %89 = vsyncpa [#allocation3], 1
    %90 = vsyncpa [#allocation6], 1
    %91 = vsyncpa [#allocation4], 1

</llo_original>
